<compile_context>
chip_gen: v6e
topology: v6e:2x2x1
jax: 0.10.0
libtpu: 0.0.40
codegen_flags: <defaults>
</compile_context>

<pallas_src>
import functools
from math import sqrt

import jax
import jax.numpy as jnp
from jax import lax
from jax.experimental import pallas as pl
from jax.experimental.pallas import tpu as pltpu


# ------------------------------- fused kernel --------------------------------
def _fused_scorer_kernel(q_ref, w_ref, k_ref, o_ref, qw_ref, *, inv_scale):
    """q:(G,tT,M)  w:(M,N)  k:(G,tS,N)  o:(G,tT,tS)  qw scratch:(G,tT,N)."""
    # Recompute the projected (and pre-scaled) queries only when a new (b, t)
    # tile begins; the s axis is innermost/"arbitrary" so qw_ref stays valid
    # across the whole s sweep.
    @pl.when(pl.program_id(2) == 0)
    def _():
        G, tT, M = q_ref.shape
        _, _, N = qw_ref.shape
        q2 = q_ref[...].reshape(G * tT, M)                 # one large MXU matmul
        qw = jnp.dot(q2, w_ref[...], preferred_element_type=jnp.float32)
        qw = qw * inv_scale                                 # scale T*N, not T*S
        qw_ref[...] = qw.reshape(G, tT, N).astype(qw_ref.dtype)

    k = k_ref[...]
    if k.dtype != qw_ref.dtype:        # trace-time check; no cast for f32/f32 or bf16/bf16
        k = k.astype(qw_ref.dtype)
    # Batched contraction on the LAST dim of both operands: the MXU consumes a
    # transposed RHS natively, so no K transpose is ever materialized.
    s = lax.dot_general(
        qw_ref[...], k,
        dimension_numbers=(((2,), (2,)), ((0,), (0,))),
        preferred_element_type=jnp.float32,
    )
    o_ref[...] = s.astype(o_ref.dtype)


# ------------------------------ tile selection --------------------------------
def _vmem_limits():
    """(block_budget_bytes, vmem_limit_bytes) sized to this TPU generation."""
    try:
        cap = int(pltpu.get_tpu_info().vmem_capacity_bytes)
    except Exception:  # pragma: no cover - conservative default (v7x per-TC)
        cap = 64 << 20
    limit = min((cap * 3) // 4, 64 << 20)   # scoped VMEM we request explicitly
    budget = limit // 2                      # bytes allowed for pipelined blocks
    return budget, limit


def _pick_tile(full, candidates=(512, 256, 128)):
    """Largest lane/sublane-friendly tile dividing `full`, else the full extent
    (full-extent blocks are always legal w.r.t. the (8,128) rule)."""
    for c in candidates:
        if full % c == 0:
            return c
    return full


def _pick_batch_group(B, steps_per_batch, per_batch_bytes, fixed_bytes, budget):
    """Largest G dividing B that fits the VMEM budget; prefers >= 2 total grid
    steps (v7x megacore + pipelining); raises if nothing fits."""
    fitting = [g for g in range(1, B + 1)
               if B % g == 0 and fixed_bytes + g * per_batch_bytes <= budget]
    if not fitting:
        raise ValueError(
            "GeneralScorer Pallas kernel: even a single (T,S) tile exceeds the "
            f"VMEM block budget ({budget} bytes); shrink T/S tiles or hidden sizes."
        )
    multi = [g for g in fitting if (B // g) * steps_per_batch >= 2]
    pool = multi if multi else fitting
    return max(pool)


# ---------------------------------- wrapper -----------------------------------
def general_scorer(query, keys, W, scaled=True):
    """query: (B, ..., T, M), keys: (B, ..., S, N), W: (M, N) -> (B, ..., T, S)."""
    M, N = W.shape
    assert query.shape[-1] == M and keys.shape[-1] == N
    lead_q, lead_k = query.shape[:-2], keys.shape[:-2]
    assert lead_q == lead_k, "leading (batch/head) dims must match"

    T, S = query.shape[-2], keys.shape[-2]
    B = 1
    for d in lead_q:
        B *= d
    q3 = query.reshape(B, T, M)
    k3 = keys.reshape(B, S, N)

    out_dtype = jnp.promote_types(jnp.promote_types(query.dtype, keys.dtype), W.dtype)
    # QW intermediate dtype: bf16 inputs keep the MXU on its full-rate path and
    # halve the scratch footprint; otherwise f32.
    qw_dtype = (jnp.bfloat16
                if q3.dtype == jnp.bfloat16 and k3.dtype == jnp.bfloat16
                else jnp.float32)

    budget, vmem_limit = _vmem_limits()
    # Lane-dense output: tS is a 128/256/512 multiple whenever S allows it.
    # Tiny S (< 128, e.g. the toy shapes below) falls back to the full extent;
    # those stores are masked but negligible at that size.
    tS = _pick_tile(S)
    tT = _pick_tile(T)
    n_t, n_s = T // tT, S // tS

    isz = lambda dt: jnp.dtype(dt).itemsize
    per_batch = (2 * tT * M * isz(q3.dtype)        # double-buffered Q blocks
                 + 2 * tS * N * isz(k3.dtype)      # double-buffered K blocks
                 + 2 * tT * tS * isz(out_dtype)    # double-buffered out blocks
                 + tT * N * isz(qw_dtype))         # resident QW scratch
    fixed = 2 * M * N * isz(W.dtype)               # W block (constant index)
    # TODO(synk): hidden-dim (M/N) tiling with an f32 accumulator is not
    # implemented; W and the hidden sizes are assumed to fit VMEM (true for
    # typical attention scorers).
    G = _pick_batch_group(B, n_t * n_s, per_batch, fixed, budget)

    inv_scale = 1.0 / (sqrt(max(M, N)) if scaled else 1.0)
    kernel = functools.partial(_fused_scorer_kernel, inv_scale=inv_scale)

    cost = pl.CostEstimate(
        flops=2 * B * T * M * N + 2 * B * T * N * S,
        transcendentals=0,
        bytes_accessed=(B * T * M * isz(q3.dtype)
                        + M * N * isz(W.dtype)
                        + B * n_t * S * N * isz(k3.dtype)
                        + B * T * S * isz(out_dtype)),
    )

    out = pl.pallas_call(
        kernel,
        out_shape=jax.ShapeDtypeStruct((B, T, S), out_dtype),
        grid_spec=pltpu.PrefetchScalarGridSpec(
            num_scalar_prefetch=0,
            grid=(B // G, n_t, n_s),
            in_specs=[
                pl.BlockSpec((G, tT, M), lambda b, t, s: (b, t, 0)),   # Q
                pl.BlockSpec((M, N), lambda b, t, s: (0, 0)),          # W (resident)
                pl.BlockSpec((G, tS, N), lambda b, t, s: (b, 0, s)),   # K
            ],
            out_specs=pl.BlockSpec((G, tT, tS), lambda b, t, s: (b, t, s)),
            scratch_shapes=[pltpu.VMEM((G, tT, N), qw_dtype)],
        ),
        compiler_params=pltpu.CompilerParams(
            dimension_semantics=("parallel", "parallel", "arbitrary"),
            vmem_limit_bytes=int(vmem_limit),
        ),
        cost_estimate=cost,
    )(q3, W, k3)

    return out.reshape(*lead_q, T, S)


def general_scorer_ref(query, keys, W, scaled=True):
    """Pure-JAX reference matching the torch einsum semantics."""
    scale = sqrt(max(W.shape)) if scaled else 1.0
    score = jnp.einsum("...tm,mn,...sn->...ts", query, W, keys)
    return score / scale


if __name__ == "__main__":
    # Small shapes consistent with the module's forward:
    # batch=2, target_len=8, source_len=8, query_size=32, key_size=32.
    B, T, S, M, N = 2, 8, 8, 32, 32

    key = jax.random.PRNGKey(0)
    kq, kk, kw, kq2, kk2 = jax.random.split(key, 5)
    query = jax.random.normal(kq, (B, T, M), dtype=jnp.float32)
    keys = jax.random.normal(kk, (B, S, N), dtype=jnp.float32)
    # Deterministic parameter init (torch.randn(query_size, key_size) analogue).
    W = jax.random.normal(kw, (M, N), dtype=jnp.float32)

    out = jax.block_until_ready(general_scorer(query, keys, W, scaled=True))
    ref = general_scorer_ref(query, keys, W, scaled=True)
    assert out.shape == (B, T, S)
    assert jnp.allclose(out, ref, atol=1e-4, rtol=1e-4), "mismatch vs reference"

    # Multi-head case exercising the '...' leading dims (heads=2).
    H = 2
    query_h = jax.random.normal(kq2, (B, H, T, M), dtype=jnp.float32)
    keys_h = jax.random.normal(kk2, (B, H, S, N), dtype=jnp.float32)
    out_h = jax.block_until_ready(general_scorer(query_h, keys_h, W, scaled=True))
    ref_h = general_scorer_ref(query_h, keys_h, W, scaled=True)
    assert out_h.shape == (B, H, T, S)
    assert jnp.allclose(out_h, ref_h, atol=1e-4, rtol=1e-4), "mismatch (multi-head)"

    print("KERNEL_OK")
</pallas_src>

<mosaic_0001>
module attributes {stable_mosaic.version = 11 : i64} {
  func.func @_fused_scorer_kernel(%arg0: i32, %arg1: i32, %arg2: i32, %arg3: memref<1x8x32xf32, #tpu.memory_space<vmem>>, %arg4: memref<32x32xf32, #tpu.memory_space<vmem>>, %arg5: memref<1x8x32xf32, #tpu.memory_space<vmem>>, %arg6: memref<1x8x8xf32, #tpu.memory_space<vmem>>, %arg7: memref<1x8x32xf32, #tpu.memory_space<vmem>>) attributes {dimension_semantics = [#tpu.dimension_semantics<parallel>, #tpu.dimension_semantics<parallel>, #tpu.dimension_semantics<arbitrary>], iteration_bounds = array<i64: 2, 1, 1>, scalar_prefetch = 0 : i64, scratch_operands = 1 : i64, tpu.core_type = #tpu.core_type<tc>, window_params = [{transform_indices = @transform_0, window_bounds = array<i64: 1, 8, 32>}, {pipeline_mode = #tpu.pipeline_mode<synchronous>, transform_indices = @transform_1, window_bounds = array<i64: 32, 32>}, {transform_indices = @transform_2, window_bounds = array<i64: 1, 8, 32>}, {transform_indices = @transform_3, window_bounds = array<i64: 1, 8, 8>}]} {
    %c0_i32 = arith.constant 0 : i32
    %0 = arith.cmpi eq, %arg2, %c0_i32 : i32
    %1 = arith.extui %0 : i1 to i32
    %c0_i32_0 = arith.constant 0 : i32
    %2 = arith.cmpi ne, %1, %c0_i32_0 : i32
    scf.if %2 {
      %c0_9 = arith.constant 0 : index
      %c0_10 = arith.constant 0 : index
      %c0_11 = arith.constant 0 : index
      %7 = vector.load %arg3[%c0_9, %c0_10, %c0_11] : memref<1x8x32xf32, #tpu.memory_space<vmem>>, vector<1x8x32xf32>
      %8 = vector.shape_cast %7 : vector<1x8x32xf32> to vector<8x32xf32>
      %c0_12 = arith.constant 0 : index
      %c0_13 = arith.constant 0 : index
      %9 = vector.load %arg4[%c0_12, %c0_13] : memref<32x32xf32, #tpu.memory_space<vmem>>, vector<32x32xf32>
      %cst_14 = arith.constant dense<0.000000e+00> : vector<8x32xf32>
      %10 = tpu.matmul %8, %9, %cst_14 {dimension_numbers = #tpu.dot_dimension_numbers<[1], [0], [0], [1], [0, 0, 1, 1], [], []>} : vector<8x32xf32>, vector<32x32xf32>, vector<8x32xf32> -> vector<8x32xf32>
      %cst_15 = arith.constant 0.176776692 : f32
      %11 = vector.broadcast %cst_15 : f32 to vector<8x32xf32>
      %12 = arith.mulf %10, %11 : vector<8x32xf32>
      %13 = vector.shape_cast %12 : vector<8x32xf32> to vector<1x8x32xf32>
      %c0_16 = arith.constant 0 : index
      %c0_17 = arith.constant 0 : index
      %c0_18 = arith.constant 0 : index
      %14 = vector.load %arg7[%c0_16, %c0_17, %c0_18] : memref<1x8x32xf32, #tpu.memory_space<vmem>>, vector<1x8x32xf32>
      tpu.vector_store %arg7[%c0_16, %c0_17, %c0_18], %13 {strides = array<i32>} : memref<1x8x32xf32, #tpu.memory_space<vmem>>, vector<1x8x32xf32>,
    } else {
    }
    %c0 = arith.constant 0 : index
    %c0_1 = arith.constant 0 : index
    %c0_2 = arith.constant 0 : index
    %3 = vector.load %arg5[%c0, %c0_1, %c0_2] : memref<1x8x32xf32, #tpu.memory_space<vmem>>, vector<1x8x32xf32>
    %c0_3 = arith.constant 0 : index
    %c0_4 = arith.constant 0 : index
    %c0_5 = arith.constant 0 : index
    %4 = vector.load %arg7[%c0_3, %c0_4, %c0_5] : memref<1x8x32xf32, #tpu.memory_space<vmem>>, vector<1x8x32xf32>
    %cst = arith.constant dense<0.000000e+00> : vector<1x8x8xf32>
    %5 = tpu.matmul %4, %3, %cst {dimension_numbers = #tpu.dot_dimension_numbers<[2], [2], [1], [1], [0, 0, 0, 1, 1, 1], [0], [0]>} : vector<1x8x32xf32>, vector<1x8x32xf32>, vector<1x8x8xf32> -> vector<1x8x8xf32>
    %c0_6 = arith.constant 0 : index
    %c0_7 = arith.constant 0 : index
    %c0_8 = arith.constant 0 : index
    %6 = vector.load %arg6[%c0_6, %c0_7, %c0_8] : memref<1x8x8xf32, #tpu.memory_space<vmem>>, vector<1x8x8xf32>
    tpu.vector_store %arg6[%c0_6, %c0_7, %c0_8], %5 {strides = array<i32>} : memref<1x8x8xf32, #tpu.memory_space<vmem>>, vector<1x8x8xf32>,
    return
  }
  func.func @transform_0(%arg0: i32, %arg1: i32, %arg2: i32) -> (i32, i32, i32) {
    %c0_i32 = arith.constant 0 : i32
    %c0_i32_0 = arith.constant 0 : i32
    return %arg0, %arg1, %c0_i32 : i32, i32, i32
  }
  func.func @transform_1(%arg0: i32, %arg1: i32, %arg2: i32) -> (i32, i32) {
    %c0_i32 = arith.constant 0 : i32
    %c0_i32_0 = arith.constant 0 : i32
    %c0_i32_1 = arith.constant 0 : i32
    return %c0_i32, %c0_i32_0 : i32, i32
  }
  func.func @transform_2(%arg0: i32, %arg1: i32, %arg2: i32) -> (i32, i32, i32) {
    %c0_i32 = arith.constant 0 : i32
    %c0_i32_0 = arith.constant 0 : i32
    return %arg0, %c0_i32, %arg2 : i32, i32, i32
  }
  func.func @transform_3(%arg0: i32, %arg1: i32, %arg2: i32) -> (i32, i32, i32) {
    %c0_i32 = arith.constant 0 : i32
    return %arg0, %arg1, %arg2 : i32, i32, i32
  }
}

</mosaic_0001>

<llo_original>
// kernel: tpu_custom_call.1
$region0: #{tpu_custom_call.1}
  #allocation0 [shape = 'u32[]', space=smem, size = 0x4, offset = 0x4, fixed_abs, tag = 'smem constant byte address 0x4 - core index']
  #allocation1 [shape = 'u32[144,128]{1,0:T(1,128)}', space=vmem, size = 0x12000, scoped, tag = 'internal scratch']
  #allocation2 [shape = 'f32[1,8,32]{2,1,0:T(8,128)}', space=vmem, size = 0x1000, scoped, tag = 'scratch operand']
  %s0 = inlined_call_operand.hbm [shape: f32[2,8,32], index: 0, kind: input, shape index: {}]
  %s1 = inlined_call_operand.hbm [shape: f32[32,32], index: 1, kind: input, shape index: {}]
  %s2 = inlined_call_operand.hbm [shape: f32[2,8,32], index: 2, kind: input, shape index: {}]
  %s3 = inlined_call_operand.hbm [shape: f32[2,8,8], index: 3, kind: output, shape index: {}]
  %s4 = sld [smem:[#allocation0]]
  $region61: #{tpu_custom_call.1} parent=0
    _
  %s6 = ssub.s32 1, %s4
  %s7 = scalar_select 0, %s6, %s4
  $region1: #{tpu_custom_call.1} parent=0
    #allocation3 [shape = 'u8[8192]{0}', space=vmem, size = 0x2000, scoped, tag = 'input window, operand 0']
    #allocation4 [shape = 's32[2]{0}', space=sflag, size = 0x8, scoped, tag = 'scoped memory for tpu_custom_call.1']
    #allocation5 [shape = 's32[2]{0}', space=sflag, size = 0x8, scoped, tag = 'scoped memory for tpu_custom_call.1']
    #allocation6 [shape = 'u8[16384]{0}', space=vmem, size = 0x4000, scoped, tag = 'input window, operand 1, single buffered']
    #allocation7 [shape = 's32[1]{0}', space=sflag, size = 0x4, scoped, tag = 'scoped memory for tpu_custom_call.1']
    #allocation8 [shape = 'u8[8192]{0}', space=vmem, size = 0x2000, scoped, tag = 'input window, operand 2']
    #allocation9 [shape = 'u8[8192]{0}', space=vmem, size = 0x2000, scoped, tag = 'output window, operand 0']
    %8 = vsyncpa [#allocation4], 0
    %s9 = scalar_lea.sflag [#allocation4], 1
    %10 = vsyncpa %s9, 0
    %11 = vsyncpa [#allocation7], 0
    %12 = vsyncpa [#allocation5], 0
    %s13 = scalar_lea.sflag [#allocation5], 1
    %14 = vsyncpa %s13, 0
    loop: start=0, step=1, limit=4
    $region2: #{tpu_custom_call.1} parent=1 // loop_pre_header
      _
    $region3: #{tpu_custom_call.1} parent=1 // loop_header
      %s16 = sphi 0, %s20
      %p17 = scmp.ge.s32.totalorder %s16, 4
      %s23 = sphi 0, %s42
      %s24 = sphi 0, %s38
      %s25 = sphi 0, %s34
      %s26 = sphi 0, %s23
      %s27 = sphi 0, %s24
      %s28 = sphi 0, %s25
      %s29 = sphi 0, %s26
      %s30 = sphi 0, %s27
      %s31 = sphi 0, %s28
      %s47 = sphi 0, %s49
      %s50 = sphi 0, %s47
      %s51 = sphi 0, %s50
      %s67 = sphi 0, %s51
      %s71 = sphi 0, %s71
      %s73 = sphi 0, %s71
      %s74 = sphi 0, %s73
      %s88 = sphi 0, %s74
      %s96 = sphi 0, %s98
      %s99 = sphi 0, %s96
      %s100 = sphi 0, %s99
      %s116 = sphi 0, %s100
      %s126 = sphi 0, %s128
      %s129 = sphi 0, %s126
      %s130 = sphi 0, %s129
      %s146 = sphi 0, %s130
    $region4: #{tpu_custom_call.1} parent=1 // loop_header_branch
      %19 = sbr.rel (%p17) target = $region8
    $region5: #{tpu_custom_call.1} parent=1 // loop_body
      %s21 = ssub.s32 %s16, 1
      %s22 = ssub.s32 %s16, 2
      %s32 = sadd.s32 1, %s25
      %p33 = scmp.ge.s32.totalorder %s32, 1
      %s34 = scalar_select %p33, 0, %s32
      %s35 = sadd.s32 1, %s24
      %s36 = scalar_select %p33, %s35, %s24
      %p37 = scmp.ge.s32.totalorder %s36, 1
      %s38 = scalar_select %p37, 0, %s36
      %s39 = sadd.s32 1, %s23
      %s40 = scalar_select %p37, %s39, %s23
      %p41 = scmp.ge.s32.totalorder %s40, 2
      %s42 = scalar_select %p41, 0, %s40
      %s43 = ssub.s32 %s23, %s42
      %s44 = ssub.s32 %s24, %s38
      %s45 = sor.u32 %s43, %s44
      %p46 = scmp.eq.s32.totalorder %s45, 0
      %s48 = sadd.s32 %s47, 1
      %s49 = scalar_select %p46, %s47, %s48
      %p52 = pneg %p46
      %p53 = scmp.eq.s32.totalorder %s16, 1
      %p54 = por %p52, %p53
      %p55 = scmp.ne.s32.totalorder %s47, %s50
      %p56 = scmp.eq.s32.totalorder %s16, 0
      %p57 = por %p55, %p56
      %p58 = scmp.ne.s32.totalorder %s47, %s50
      %p59 = scmp.eq.s32.totalorder %s21, 1
      %p60 = por %p58, %p59
      %p61 = scmp.ne.s32.totalorder %s50, %s51
      %p62 = scmp.eq.s32.totalorder %s21, 0
      %p63 = por %p61, %p62
      %p64 = scmp.ne.s32.totalorder %s50, %s51
      %p65 = scmp.eq.s32.totalorder %s22, 1
      %p66 = por %p64, %p65
      %p68 = scmp.ne.s32.totalorder %s51, %s67
      %p69 = scmp.eq.s32.totalorder %s22, 0
      %p70 = por %p68, %p69
      %s72 = sadd.s32 %s71, 1
      %p75 = scmp.eq.s32.totalorder %s16, 1
      %p76 = scmp.ne.s32.totalorder %s71, %s73
      %p77 = scmp.eq.s32.totalorder %s16, 0
      %p78 = por %p76, %p77
      %p79 = scmp.ne.s32.totalorder %s71, %s73
      %p80 = scmp.eq.s32.totalorder %s21, 1
      %p81 = por %p79, %p80
      %p82 = scmp.ne.s32.totalorder %s73, %s74
      %p83 = scmp.eq.s32.totalorder %s21, 0
      %p84 = por %p82, %p83
      %p85 = scmp.ne.s32.totalorder %s73, %s74
      %p86 = scmp.eq.s32.totalorder %s22, 1
      %p87 = por %p85, %p86
      %p89 = scmp.ne.s32.totalorder %s74, %s88
      %p90 = scmp.eq.s32.totalorder %s22, 0
      %p91 = por %p89, %p90
      %s92 = ssub.s32 %s23, %s42
      %s93 = ssub.s32 %s25, %s34
      %s94 = sor.u32 %s92, %s93
      %p95 = scmp.eq.s32.totalorder %s94, 0
      %s97 = sadd.s32 %s96, 1
      %s98 = scalar_select %p95, %s96, %s97
      %p101 = pneg %p95
      %p102 = scmp.eq.s32.totalorder %s16, 1
      %p103 = por %p101, %p102
      %p104 = scmp.ne.s32.totalorder %s96, %s99
      %p105 = scmp.eq.s32.totalorder %s16, 0
      %p106 = por %p104, %p105
      %p107 = scmp.ne.s32.totalorder %s96, %s99
      %p108 = scmp.eq.s32.totalorder %s21, 1
      %p109 = por %p107, %p108
      %p110 = scmp.ne.s32.totalorder %s99, %s100
      %p111 = scmp.eq.s32.totalorder %s21, 0
      %p112 = por %p110, %p111
      %p113 = scmp.ne.s32.totalorder %s99, %s100
      %p114 = scmp.eq.s32.totalorder %s22, 1
      %p115 = por %p113, %p114
      %p117 = scmp.ne.s32.totalorder %s100, %s116
      %p118 = scmp.eq.s32.totalorder %s22, 0
      %p119 = por %p117, %p118
      %s120 = ssub.s32 %s23, %s42
      %s121 = ssub.s32 %s24, %s38
      %s122 = sor.u32 %s120, %s121
      %s123 = ssub.s32 %s25, %s34
      %s124 = sor.u32 %s122, %s123
      %p125 = scmp.eq.s32.totalorder %s124, 0
      %s127 = sadd.s32 %s126, 1
      %s128 = scalar_select %p125, %s126, %s127
      %p131 = pneg %p125
      %p132 = scmp.eq.s32.totalorder %s16, 1
      %p133 = por %p131, %p132
      %p134 = scmp.ne.s32.totalorder %s126, %s129
      %p135 = scmp.eq.s32.totalorder %s16, 0
      %p136 = por %p134, %p135
      %p137 = scmp.ne.s32.totalorder %s126, %s129
      %p138 = scmp.eq.s32.totalorder %s21, 1
      %p139 = por %p137, %p138
      %p140 = scmp.ne.s32.totalorder %s129, %s130
      %p141 = scmp.eq.s32.totalorder %s21, 0
      %p142 = por %p140, %p141
      %p143 = scmp.ne.s32.totalorder %s129, %s130
      %p144 = scmp.eq.s32.totalorder %s22, 1
      %p145 = por %p143, %p144
      %p147 = scmp.ne.s32.totalorder %s130, %s146
      %p148 = scmp.eq.s32.totalorder %s22, 0
      %p149 = por %p147, %p148
      %p150 = scmp.le.s32.totalorder 1, %s16
      %p151 = scmp.lt.s32.totalorder %s16, 3
      %p152 = pnand %p150, %p151
      %p153 = pneg %p152
      // Predicated region
      $region9: #{tpu_custom_call.1} parent=5 // pred_check
        _
      $region10: #{tpu_custom_call.1} parent=5 // pred_check_branch
        %155 = sbr.rel (%p152) target = $region12
      $region11: #{tpu_custom_call.1} parent=5 // pred_region
        %s156 = ssub.s32 %s16, 1
        // Predicated region
        $region13: #{tpu_custom_call.1} parent=11 // pred_check
          %p157 = pneg %p84
        $region14: #{tpu_custom_call.1} parent=11 // pred_check_branch
          %159 = sbr.rel (%p157) target = $region16
        $region15: #{tpu_custom_call.1} parent=11 // pred_region
          %s161 = ssub.s32 512, 512
          %162 = vsyncadd [#allocation7], %s161
          %s163 = sshll.u32 [#allocation6], 4
          %s164 = int_to_ptr.vmem [resolvable:$true] %s163
          %169 = dma.hbm_to_vmem [thread:$0]  %s1, 512, %s164, [#allocation7], 128, 128, 8
        $region16: #{tpu_custom_call.1} parent=11 // pred_fallthru
          _
      $region12: #{tpu_custom_call.1} parent=5 // pred_fallthru
        _
      %p170 = scmp.lt.s32.totalorder %s16, 2
      // Predicated region
      $region17: #{tpu_custom_call.1} parent=5 // pred_check
        %p171 = pneg %p170
      $region18: #{tpu_custom_call.1} parent=5 // pred_check_branch
        %173 = sbr.rel (%p171) target = $region20
      $region19: #{tpu_custom_call.1} parent=5 // pred_region
        // Predicated region
        $region21: #{tpu_custom_call.1} parent=19 // pred_check
          %p174 = pneg %p57
        $region22: #{tpu_custom_call.1} parent=19 // pred_check_branch
          %176 = sbr.rel (%p174) target = $region24
        $region23: #{tpu_custom_call.1} parent=19 // pred_region
          %s177 = sand.u32 %s16, 1
          %s178 = scalar_lea.sflag [#allocation4], %s177
          %s179 = sand.u32 %s47, 1
          %s180 = smul.addr %s179, 8
          %s181 = scalar_lea.vmem [#allocation3], %s180
          %s183 = ssub.s32 128, 128
          %184 = vsyncadd %s178, %s183
          %s185 = sadd.s32 %s24, %s23
          %s186 = smul.addr %s185, 128
          %s187 = scalar_lea.hbm %s0, %s186
          %s189 = sshll.u32 %s181, 4
          %s190 = int_to_ptr.vmem [resolvable:$true] %s189
          %192 = dma.hbm_to_vmem [thread:$0]  %s187, 128, %s190, %s178
        $region24: #{tpu_custom_call.1} parent=19 // pred_fallthru
          _
        // Predicated region
        $region25: #{tpu_custom_call.1} parent=19 // pred_check
          %p193 = pneg %p106
        $region26: #{tpu_custom_call.1} parent=19 // pred_check_branch
          %195 = sbr.rel (%p193) target = $region28
        $region27: #{tpu_custom_call.1} parent=19 // pred_region
          %s196 = sand.u32 %s16, 1
          %s197 = scalar_lea.sflag [#allocation4], %s196
          %s198 = sand.u32 %s96, 1
          %s199 = smul.addr %s198, 8
          %s200 = scalar_lea.vmem [#allocation8], %s199
          %s202 = ssub.s32 128, 128
          %203 = vsyncadd %s197, %s202
          %s204 = sadd.s32 %s25, %s23
          %s205 = smul.addr %s204, 128
          %s206 = scalar_lea.hbm %s2, %s205
          %s208 = sshll.u32 %s200, 4
          %s209 = int_to_ptr.vmem [resolvable:$true] %s208
          %211 = dma.hbm_to_vmem [thread:$0]  %s206, 128, %s209, %s197
        $region28: #{tpu_custom_call.1} parent=19 // pred_fallthru
          _
      $region20: #{tpu_custom_call.1} parent=5 // pred_fallthru
        _
      %p212 = scmp.le.s32.totalorder 1, %s16
      %p213 = scmp.lt.s32.totalorder %s16, 3
      %p214 = pnand %p212, %p213
      %p215 = pneg %p214
      // Predicated region
      $region29: #{tpu_custom_call.1} parent=5 // pred_check
        _
      $region30: #{tpu_custom_call.1} parent=5 // pred_check_branch
        %217 = sbr.rel (%p214) target = $region32
      $region31: #{tpu_custom_call.1} parent=5 // pred_region
        %s218 = ssub.s32 %s16, 1
        %s219 = sand.u32 %s21, 1
        %s220 = scalar_lea.sflag [#allocation4], %s219
        %s221 = sand.u32 %s50, 1
        %s222 = smul.addr %s221, 8
        %s223 = scalar_lea.vmem [#allocation3], %s222
        // Predicated region
        $region33: #{tpu_custom_call.1} parent=31 // pred_check
          %p224 = pneg %p63
        $region34: #{tpu_custom_call.1} parent=31 // pred_check_branch
          %226 = sbr.rel (%p224) target = $region36
        $region35: #{tpu_custom_call.1} parent=31 // pred_region
          %227 = dma.done %s220, 128
        $region36: #{tpu_custom_call.1} parent=31 // pred_fallthru
          _
        // Predicated region
        $region37: #{tpu_custom_call.1} parent=31 // pred_check
          %p228 = pneg %p84
        $region38: #{tpu_custom_call.1} parent=31 // pred_check_branch
          %230 = sbr.rel (%p228) target = $region40
        $region39: #{tpu_custom_call.1} parent=31 // pred_region
          %231 = dma.done [#allocation7], 512
        $region40: #{tpu_custom_call.1} parent=31 // pred_fallthru
          _
        %s232 = sand.u32 %s21, 1
        %s233 = scalar_lea.sflag [#allocation4], %s232
        %s234 = sand.u32 %s99, 1
        %s235 = smul.addr %s234, 8
        %s236 = scalar_lea.vmem [#allocation8], %s235
        // Predicated region
        $region41: #{tpu_custom_call.1} parent=31 // pred_check
          %p237 = pneg %p112
        $region42: #{tpu_custom_call.1} parent=31 // pred_check_branch
          %239 = sbr.rel (%p237) target = $region44
        $region43: #{tpu_custom_call.1} parent=31 // pred_region
          %240 = dma.done %s233, 128
        $region44: #{tpu_custom_call.1} parent=31 // pred_fallthru
          _
        %s241 = sand.u32 %s21, 1
        %s242 = scalar_lea.sflag [#allocation4], %s241
        %s243 = sand.u32 %s50, 1
        %s244 = smul.addr %s243, 8
        %s245 = scalar_lea.vmem [#allocation3], %s244
        %p246 = pneg %p63
        %p247 = pneg %p60
        %p248 = pneg %p84
        %p249 = pneg %p81
        %s250 = sand.u32 %s21, 1
        %s251 = scalar_lea.sflag [#allocation4], %s250
        %s252 = sand.u32 %s99, 1
        %s253 = smul.addr %s252, 8
        %s254 = scalar_lea.vmem [#allocation8], %s253
        %p255 = pneg %p112
        %p256 = pneg %p109
        %p257 = pneg %p142
        %p258 = pneg %p139
        %s259 = sand.u32 %s129, 1
        %s260 = scalar_lea.sflag [#allocation5], %s259
        %s261 = sand.u32 %s129, 1
        %s262 = smul.addr %s261, 8
        %s263 = scalar_lea.vmem [#allocation9], %s262
        %p264 = scmp.eq.s32.totalorder %s28, 0
        // Predicated region
        $region45: #{tpu_custom_call.1} parent=31 // pred_check
          %p265 = pneg %p264
        $region46: #{tpu_custom_call.1} parent=31 // pred_check_branch
          %267 = sbr.rel (%p265) target = $region48
        $region47: #{tpu_custom_call.1} parent=31 // pred_region
          %v268 = vld [vmem:[%s223] sm:$0xff]
          %v269 = vld [vmem:[#allocation6] sm:$0xff]
          %v270 = vld [vmem:[#allocation6 + $0x8] sm:$0xff]
          %v271 = vld [vmem:[#allocation6 + $0x10] sm:$0xff]
          %v272 = vld [vmem:[#allocation6 + $0x18] sm:$0xff]
          %vm273 = vcmask 261120
          %v275 = vsel %vm273, %v268, 0
          %277 = vmatprep.subr.mxu0 0.0
          %278 = vmatpush1.msra.mxu0 0.0
          %279 = vmatprep.subr.mxu0 0.0
          %280 = vmatpush1.msra.mxu0 0.0
          %281 = vmatprep.subr.mxu0 0.0
          %282 = vmatpush1.msra.mxu0 0.0
          %283 = vmatprep.subr.mxu0 0.0
          %284 = vmatpush1.msra.mxu0 0.0
          %285 = vmatprep.subr.mxu0 0.0
          %286 = vmatpush1.msra.mxu0 0.0
          %287 = vmatprep.subr.mxu0 0.0
          %288 = vmatpush1.msra.mxu0 0.0
          %289 = vmatprep.subr.mxu0 0.0
          %290 = vmatpush1.msra.mxu0 0.0
          %291 = vmatprep.subr.mxu0 0.0
          %292 = vmatpush1.msra.mxu0 0.0
          %293 = vmatprep.subr.mxu0 0.0
          %294 = vmatpush1.msra.mxu0 0.0
          %295 = vmatprep.subr.mxu0 0.0
          %296 = vmatpush1.msra.mxu0 0.0
          %297 = vmatprep.subr.mxu0 0.0
          %298 = vmatpush1.msra.mxu0 0.0
          %299 = vmatprep.subr.mxu0 0.0
          %300 = vmatpush1.msra.mxu0 0.0
          %301 = vmatprep.subr.mxu0 0.0
          %302 = vmatpush1.msra.mxu0 %v272
          %303 = vmatprep.subr.mxu0 0.0
          %304 = vmatpush1.msra.mxu0 %v271
          %305 = vmatprep.subr.mxu0 0.0
          %306 = vmatpush1.msra.mxu0 %v270
          %307 = vmatprep.subr.mxu0 0.0
          %308 = vmatpush1.msra.mxu0 %v269
          %309 = vmatprep.subr.mxu0 0.0
          %310 = vmatpush2.msra.mxu0 0.0
          %311 = vmatprep.subr.mxu0 0.0
          %312 = vmatpush2.msra.mxu0 0.0
          %313 = vmatprep.subr.mxu0 0.0
          %314 = vmatpush2.msra.mxu0 0.0
          %315 = vmatprep.subr.mxu0 0.0
          %316 = vmatpush2.msra.mxu0 0.0
          %317 = vmatprep.subr.mxu0 0.0
          %318 = vmatpush2.msra.mxu0 0.0
          %319 = vmatprep.subr.mxu0 0.0
          %320 = vmatpush2.msra.mxu0 0.0
          %321 = vmatprep.subr.mxu0 0.0
          %322 = vmatpush2.msra.mxu0 0.0
          %323 = vmatprep.subr.mxu0 0.0
          %324 = vmatpush2.msra.mxu0 0.0
          %325 = vmatprep.subr.mxu0 0.0
          %326 = vmatpush2.msra.mxu0 0.0
          %327 = vmatprep.subr.mxu0 0.0
          %328 = vmatpush2.msra.mxu0 0.0
          %329 = vmatprep.subr.mxu0 0.0
          %330 = vmatpush2.msra.mxu0 0.0
          %331 = vmatprep.subr.mxu0 0.0
          %332 = vmatpush2.msra.mxu0 0.0
          %333 = vmatprep.subr.mxu0 0.0
          %334 = vmatpush2.msra.mxu0 0.0
          %335 = vmatprep.subr.mxu0 0.0
          %336 = vmatpush2.msra.mxu0 0.0
          %337 = vmatprep.subr.mxu0 0.0
          %338 = vmatpush2.msra.mxu0 0.0
          %339 = vmatprep.subr.mxu0 0.0
          %340 = vmatpush2.msra.mxu0 0.0
          %341 = vmatprep.mubr.f32.mxu0 0.0
          %342 = vmatmul.mubr.f32.gmra.mxu0 %v275
          %v343 = vpop.f32.mrf.mxu0
          %v344 = vadd.f32 0.0, %v343
          %v345 = vpop.f32.mrf.mxu0
          %346 = vdwg.mxu0
          %v347 = vmul.f32 %v344, 0.17677669
          %348 = vst.msk [vmem:[#allocation2] sm:$0xff] %vm273, %v347
        $region48: #{tpu_custom_call.1} parent=31 // pred_fallthru
          _
        %v349 = vld [vmem:[%s236] sm:$0xff]
        %v350 = vld [vmem:[#allocation2] sm:$0xff]
        %vm351 = vcmask 261120
        %v353 = vsel %vm351, %v350, 0
        %v356 = vsel %vm351, %v349, 0
        %358 = vmatprep.subr.mxu0 0.0
        %359 = vmatpush1.xpose.msra.mxu0 0.0
        %360 = vmatprep.subr.mxu0 0.0
        %361 = vmatpush1.xpose.msra.mxu0 0.0
        %362 = vmatprep.subr.mxu0 0.0
        %363 = vmatpush1.xpose.msra.mxu0 0.0
        %364 = vmatprep.subr.mxu0 0.0
        %365 = vmatpush1.xpose.msra.mxu0 0.0
        %366 = vmatprep.subr.mxu0 0.0
        %367 = vmatpush1.xpose.msra.mxu0 0.0
        %368 = vmatprep.subr.mxu0 0.0
        %369 = vmatpush1.xpose.msra.mxu0 0.0
        %370 = vmatprep.subr.mxu0 0.0
        %371 = vmatpush1.xpose.msra.mxu0 0.0
        %372 = vmatprep.subr.mxu0 0.0
        %373 = vmatpush1.xpose.msra.mxu0 0.0
        %374 = vmatprep.subr.mxu0 0.0
        %375 = vmatpush1.xpose.msra.mxu0 0.0
        %376 = vmatprep.subr.mxu0 0.0
        %377 = vmatpush1.xpose.msra.mxu0 0.0
        %378 = vmatprep.subr.mxu0 0.0
        %379 = vmatpush1.xpose.msra.mxu0 0.0
        %380 = vmatprep.subr.mxu0 0.0
        %381 = vmatpush1.xpose.msra.mxu0 0.0
        %382 = vmatprep.subr.mxu0 0.0
        %383 = vmatpush1.xpose.msra.mxu0 0.0
        %384 = vmatprep.subr.mxu0 0.0
        %385 = vmatpush1.xpose.msra.mxu0 0.0
        %386 = vmatprep.subr.mxu0 0.0
        %387 = vmatpush1.xpose.msra.mxu0 0.0
        %388 = vmatprep.subr.mxu0 0.0
        %389 = vmatpush1.xpose.msra.mxu0 %v356
        %390 = vmatprep.subr.mxu0 0.0
        %391 = vmatpush2.xpose.msra.mxu0 0.0
        %392 = vmatprep.subr.mxu0 0.0
        %393 = vmatpush2.xpose.msra.mxu0 0.0
        %394 = vmatprep.subr.mxu0 0.0
        %395 = vmatpush2.xpose.msra.mxu0 0.0
        %396 = vmatprep.subr.mxu0 0.0
        %397 = vmatpush2.xpose.msra.mxu0 0.0
        %398 = vmatprep.subr.mxu0 0.0
        %399 = vmatpush2.xpose.msra.mxu0 0.0
        %400 = vmatprep.subr.mxu0 0.0
        %401 = vmatpush2.xpose.msra.mxu0 0.0
        %402 = vmatprep.subr.mxu0 0.0
        %403 = vmatpush2.xpose.msra.mxu0 0.0
        %404 = vmatprep.subr.mxu0 0.0
        %405 = vmatpush2.xpose.msra.mxu0 0.0
        %406 = vmatprep.subr.mxu0 0.0
        %407 = vmatpush2.xpose.msra.mxu0 0.0
        %408 = vmatprep.subr.mxu0 0.0
        %409 = vmatpush2.xpose.msra.mxu0 0.0
        %410 = vmatprep.subr.mxu0 0.0
        %411 = vmatpush2.xpose.msra.mxu0 0.0
        %412 = vmatprep.subr.mxu0 0.0
        %413 = vmatpush2.xpose.msra.mxu0 0.0
        %414 = vmatprep.subr.mxu0 0.0
        %415 = vmatpush2.xpose.msra.mxu0 0.0
        %416 = vmatprep.subr.mxu0 0.0
        %417 = vmatpush2.xpose.msra.mxu0 0.0
        %418 = vmatprep.subr.mxu0 0.0
        %419 = vmatpush2.xpose.msra.mxu0 0.0
        %420 = vmatprep.subr.mxu0 0.0
        %421 = vmatpush2.xpose.msra.mxu0 0.0
        %422 = vmatprep.mubr.f32.mxu0 0.0
        %423 = vmatmul.mubr.f32.gmra.mxu0 %v353
        %v424 = vpop.f32.mrf.mxu0
        %v425 = vadd.f32 0.0, %v424
        %v426 = vpop.f32.mrf.mxu0
        %427 = vdwg.mxu0
        %vm428 = vcmask 64512
        %429 = vst.msk [vmem:[%s263] sm:$0xff] %vm428, %v425
        %s430 = sand.u32 %s129, 1
        %s431 = scalar_lea.sflag [#allocation5], %s430
        %s432 = sand.u32 %s129, 1
        %s433 = smul.addr %s432, 8
        %s434 = scalar_lea.vmem [#allocation9], %s433
        // Predicated region
        $region49: #{tpu_custom_call.1} parent=31 // pred_check
          %p435 = pneg %p139
        $region50: #{tpu_custom_call.1} parent=31 // pred_check_branch
          %437 = sbr.rel (%p435) target = $region52
        $region51: #{tpu_custom_call.1} parent=31 // pred_region
          %s439 = ssub.s32 128, 128
          %440 = vsyncadd %s431, %s439
          %s441 = sadd.s32 %s28, %s27
          %s442 = sadd.s32 %s441, %s26
          %s443 = smul.addr %s442, 128
          %s444 = scalar_lea.hbm %s3, %s443
          %s446 = sshll.u32 %s434, 4
          %s447 = int_to_ptr.vmem [resolvable:$true] %s446
          %449 = dma.vmem_to_hbm [thread:$0]  %s447, 128, %s444, %s431
        $region52: #{tpu_custom_call.1} parent=31 // pred_fallthru
          _
      $region32: #{tpu_custom_call.1} parent=5 // pred_fallthru
        _
      %p450 = scmp.le.s32.totalorder 2, %s16
      // Predicated region
      $region53: #{tpu_custom_call.1} parent=5 // pred_check
        %p451 = pneg %p450
      $region54: #{tpu_custom_call.1} parent=5 // pred_check_branch
        %453 = sbr.rel (%p451) target = $region56
      $region55: #{tpu_custom_call.1} parent=5 // pred_region
        %s454 = ssub.s32 %s16, 2
        // Predicated region
        $region57: #{tpu_custom_call.1} parent=55 // pred_check
          %p455 = pneg %p145
        $region58: #{tpu_custom_call.1} parent=55 // pred_check_branch
          %457 = sbr.rel (%p455) target = $region60
        $region59: #{tpu_custom_call.1} parent=55 // pred_region
          %s458 = sand.u32 %s130, 1
          %s459 = scalar_lea.sflag [#allocation5], %s458
          %s460 = sand.u32 %s130, 1
          %s461 = smul.addr %s460, 8
          %s462 = scalar_lea.vmem [#allocation9], %s461
          %463 = dma.done %s459, 128
        $region60: #{tpu_custom_call.1} parent=55 // pred_fallthru
          _
      $region56: #{tpu_custom_call.1} parent=5 // pred_fallthru
        _
    $region6: #{tpu_custom_call.1} parent=1 // loop_footer
      %s20 = sadd.s32 1, %s16
    $region7: #{tpu_custom_call.1} parent=1 // loop_footer_branch
      %15 = sbr.rel target = $region3
    $region8: #{tpu_custom_call.1} parent=1 // loop_exit
      _
    %464 = vsyncpa [#allocation4], 1
    %s465 = scalar_lea.sflag [#allocation4], 1
    %466 = vsyncpa %s465, 1
    %467 = vsyncpa [#allocation7], 1
    %468 = vsyncpa [#allocation5], 1
    %s469 = scalar_lea.sflag [#allocation5], 1
    %470 = vsyncpa %s469, 1

</llo_original>
